<compile_context>
chip_gen: v7x
topology: tpu7x:2x2x1
jax: 0.10.0
libtpu: 0.0.40
codegen_flags: <defaults>
</compile_context>

<pallas_src>
import functools

import jax
import jax.numpy as jnp
import numpy as np
from jax.experimental import pallas as pl
from jax.experimental.pallas import tpu as pltpu

_LANE = 128
_NEG = -1.0e30  # softmax pad value for the D axis (exp(pad - max) == 0)


def _model_kernel(w_ref, mat_ref, n_ref, x_ref, y_ref, x_acc, s_acc, *, d_valid):
    i = pl.program_id(0)

    @pl.when(i == 0)
    def _():
        x_acc[...] = jnp.zeros_like(x_acc)
        s_acc[...] = jnp.zeros_like(s_acc)

    w = w_ref[...]                                       # (tile_f, 128) f32
    # numerically-stable softmax along the day axis (lanes); padded lanes -> exp() == 0
    m = jnp.max(w, axis=-1, keepdims=True)
    e = jnp.exp(w - m)
    p = e / jnp.sum(e, axis=-1, keepdims=True)           # (tile_f, 128)

    # Per-lane partial sums (pure sublane reduce each step); cross-lane reduce is deferred
    # to the final grid step.  mat pad lanes are 0, so x needs no lane mask.
    x_acc[...] += jnp.sum(p * mat_ref[...], axis=0, keepdims=True)   # (1, 128)
    s_acc[...] += jnp.sum(p * n_ref[...], axis=0, keepdims=True)     # (1, 128)

    @pl.when(i == pl.num_programs(0) - 1)
    def _():
        x_ref[...] = jnp.sum(x_acc[...]).reshape(1, 1)
        # Mask the padded lanes: otherwise each would add (0 - 200)^2 to y.
        lane = jax.lax.broadcasted_iota(jnp.int32, s_acc.shape, 1)
        d = jnp.where(lane < d_valid, s_acc[...] - 200.0, 0.0)
        y_ref[...] = jnp.sum(d * d).reshape(1, 1)


def model_forward(weight, mat, n_people, *, tile_f=1024):
    """Returns (x, y) as two f32 scalars (forward pass of the PyTorch Model)."""
    F, D = weight.shape
    assert mat.shape == (F, D) and n_people.shape[0] == F

    # Lane-dense D padding and (8,128)-friendly F tiling.
    d_pad = pl.cdiv(D, _LANE) * _LANE
    tf = min(int(tile_f), pl.cdiv(F, 8) * 8)
    tf = max(8, (tf // 8) * 8)                # tile_f must be a multiple of 8
    f_pad = pl.cdiv(F, tf) * tf
    grid = (f_pad // tf,)

    w32 = weight.astype(jnp.float32)
    m32 = mat.astype(jnp.float32)
    n32 = n_people.astype(jnp.float32)

    # Padded inputs: weight pad -> -1e30 (softmax ~0), mat pad -> 0, n pad -> 0.
    w_p = jnp.full((f_pad, d_pad), _NEG, jnp.float32).at[:F, :D].set(w32)
    m_p = jnp.zeros((f_pad, d_pad), jnp.float32).at[:F, :D].set(m32)
    n_p = jnp.zeros((f_pad, 1), jnp.float32).at[:F, 0].set(n32)

    kernel = functools.partial(_model_kernel, d_valid=D)

    x, y = pl.pallas_call(
        kernel,
        out_shape=(
            jax.ShapeDtypeStruct((1, 1), jnp.float32),
            jax.ShapeDtypeStruct((1, 1), jnp.float32),
        ),
        grid_spec=pltpu.PrefetchScalarGridSpec(
            num_scalar_prefetch=0,
            grid=grid,
            in_specs=[
                pl.BlockSpec((tf, d_pad), lambda i: (i, 0)),   # weight tile
                pl.BlockSpec((tf, d_pad), lambda i: (i, 0)),   # mat tile
                pl.BlockSpec((tf, 1), lambda i: (i, 0)),       # n_people column tile
            ],
            out_specs=(
                pl.BlockSpec((1, 1), lambda i: (0, 0)),
                pl.BlockSpec((1, 1), lambda i: (0, 0)),
            ),
            scratch_shapes=[
                pltpu.VMEM((1, d_pad), jnp.float32),   # per-lane x accumulator
                pltpu.VMEM((1, d_pad), jnp.float32),   # per-lane p.T @ n accumulator
            ],
        ),
        compiler_params=pltpu.CompilerParams(
            dimension_semantics=("arbitrary",),        # reduction over row tiles
        ),
    )(w_p, m_p, n_p)
    return x[0, 0], y[0, 0]


def _reference(weight, mat, n_people):
    p = jax.nn.softmax(weight, axis=1)
    x = jnp.sum(p * mat)
    y = jnp.sum((p.T @ n_people - 200.0) ** 2)
    return x, y


def _check(F, D, seed=0):
    key = jax.random.PRNGKey(seed)
    k_w, k_m, k_n = jax.random.split(key, 3)
    # weight.data.uniform_(0, 5)
    weight = jax.random.uniform(k_w, (F, D), jnp.float32, minval=0.0, maxval=5.0)
    # the original script uses a zero cost-matrix placeholder; use a deterministic
    # non-trivial one here so the x-path is actually exercised.
    mat = jax.random.uniform(k_m, (F, D), jnp.float32, minval=0.0, maxval=10.0)
    # family sizes, 2..8 people
    n_people = jax.random.randint(k_n, (F,), 2, 9).astype(jnp.float32)

    x, y = model_forward(weight, mat, n_people)
    jax.block_until_ready((x, y))

    x_ref, y_ref = _reference(weight, mat, n_people)
    np.testing.assert_allclose(np.asarray(x), np.asarray(x_ref), rtol=1e-4, atol=1e-3)
    np.testing.assert_allclose(np.asarray(y), np.asarray(y_ref), rtol=1e-4, atol=1e-2)


if __name__ == "__main__":
    # Small shapes consistent with the module (original is 5000 families x 100 days).
    _check(512, 100)   # single grid step, padded D
    _check(250, 100)   # exercises F padding (not a multiple of the tile / of 8's tile)
    print("KERNEL_OK")
</pallas_src>

<mosaic_0001>
module attributes {stable_mosaic.version = 11 : i64} {
  func.func @_model_kernel(%arg0: i32, %arg1: memref<512x128xf32, #tpu.memory_space<vmem>>, %arg2: memref<512x128xf32, #tpu.memory_space<vmem>>, %arg3: memref<512x1xf32, #tpu.memory_space<vmem>>, %arg4: memref<1x1xf32, #tpu.memory_space<vmem>>, %arg5: memref<1x1xf32, #tpu.memory_space<vmem>>, %arg6: memref<1x128xf32, #tpu.memory_space<vmem>>, %arg7: memref<1x128xf32, #tpu.memory_space<vmem>>) attributes {dimension_semantics = [#tpu.dimension_semantics<arbitrary>], iteration_bounds = array<i64: 1>, scalar_prefetch = 0 : i64, scratch_operands = 2 : i64, tpu.core_type = #tpu.core_type<tc>, window_params = [{transform_indices = @transform_0, window_bounds = array<i64: 512, 128>}, {transform_indices = @transform_1, window_bounds = array<i64: 512, 128>}, {transform_indices = @transform_2, window_bounds = array<i64: 512, 1>}, {pipeline_mode = #tpu.pipeline_mode<synchronous>, transform_indices = @transform_3, window_bounds = array<i64: 1, 1>}, {pipeline_mode = #tpu.pipeline_mode<synchronous>, transform_indices = @transform_4, window_bounds = array<i64: 1, 1>}]} {
    %c0_i32 = arith.constant 0 : i32
    %0 = arith.cmpi eq, %arg0, %c0_i32 : i32
    %1 = arith.extui %0 : i1 to i32
    %c0_i32_0 = arith.constant 0 : i32
    %2 = arith.cmpi ne, %1, %c0_i32_0 : i32
    scf.if %2 {
      %cst_19 = arith.constant 0.000000e+00 : f32
      %31 = vector.broadcast %cst_19 : f32 to vector<1x128xf32>
      %c0_20 = arith.constant 0 : index
      %c0_21 = arith.constant 0 : index
      %32 = vector.load %arg6[%c0_20, %c0_21] : memref<1x128xf32, #tpu.memory_space<vmem>>, vector<1x128xf32>
      tpu.vector_store %arg6[%c0_20, %c0_21], %31 {strides = array<i32>} : memref<1x128xf32, #tpu.memory_space<vmem>>, vector<1x128xf32>,
      %cst_22 = arith.constant 0.000000e+00 : f32
      %33 = vector.broadcast %cst_22 : f32 to vector<1x128xf32>
      %c0_23 = arith.constant 0 : index
      %c0_24 = arith.constant 0 : index
      %34 = vector.load %arg7[%c0_23, %c0_24] : memref<1x128xf32, #tpu.memory_space<vmem>>, vector<1x128xf32>
      tpu.vector_store %arg7[%c0_23, %c0_24], %33 {strides = array<i32>} : memref<1x128xf32, #tpu.memory_space<vmem>>, vector<1x128xf32>,
    } else {
    }
    %c0 = arith.constant 0 : index
    %c0_1 = arith.constant 0 : index
    %3 = vector.load %arg1[%c0, %c0_1] : memref<512x128xf32, #tpu.memory_space<vmem>>, vector<512x128xf32>
    %cst = arith.constant dense<0xFF800000> : vector<512xf32>
    %4 = vector.multi_reduction <maximumf>, %3, %cst [1] : vector<512x128xf32> to vector<512xf32>
    %5 = vector.shape_cast %4 : vector<512xf32> to vector<512x1xf32>
    %6 = vector.broadcast %5 : vector<512x1xf32> to vector<512x128xf32>
    %7 = arith.subf %3, %6 : vector<512x128xf32>
    %8 = math.exp %7 : vector<512x128xf32>
    %cst_2 = arith.constant dense<0.000000e+00> : vector<512xf32>
    %9 = vector.multi_reduction <add>, %8, %cst_2 [1] : vector<512x128xf32> to vector<512xf32>
    %10 = vector.shape_cast %9 : vector<512xf32> to vector<512x1xf32>
    %11 = vector.broadcast %10 : vector<512x1xf32> to vector<512x128xf32>
    %12 = arith.divf %8, %11 : vector<512x128xf32>
    %c0_3 = arith.constant 0 : index
    %c0_4 = arith.constant 0 : index
    %13 = vector.load %arg6[%c0_3, %c0_4] : memref<1x128xf32, #tpu.memory_space<vmem>>, vector<1x128xf32>
    %c0_5 = arith.constant 0 : index
    %c0_6 = arith.constant 0 : index
    %14 = vector.load %arg2[%c0_5, %c0_6] : memref<512x128xf32, #tpu.memory_space<vmem>>, vector<512x128xf32>
    %15 = arith.mulf %12, %14 : vector<512x128xf32>
    %cst_7 = arith.constant dense<0.000000e+00> : vector<128xf32>
    %16 = vector.multi_reduction <add>, %15, %cst_7 [0] : vector<512x128xf32> to vector<128xf32>
    %17 = vector.shape_cast %16 : vector<128xf32> to vector<1x128xf32>
    %18 = arith.addf %13, %17 : vector<1x128xf32>
    %c0_8 = arith.constant 0 : index
    %c0_9 = arith.constant 0 : index
    %19 = vector.load %arg6[%c0_8, %c0_9] : memref<1x128xf32, #tpu.memory_space<vmem>>, vector<1x128xf32>
    tpu.vector_store %arg6[%c0_8, %c0_9], %18 {strides = array<i32>} : memref<1x128xf32, #tpu.memory_space<vmem>>, vector<1x128xf32>,
    %c0_10 = arith.constant 0 : index
    %c0_11 = arith.constant 0 : index
    %20 = vector.load %arg7[%c0_10, %c0_11] : memref<1x128xf32, #tpu.memory_space<vmem>>, vector<1x128xf32>
    %c0_12 = arith.constant 0 : index
    %c0_13 = arith.constant 0 : index
    %21 = vector.load %arg3[%c0_12, %c0_13] : memref<512x1xf32, #tpu.memory_space<vmem>>, vector<512x1xf32>
    %22 = vector.broadcast %21 : vector<512x1xf32> to vector<512x128xf32>
    %23 = arith.mulf %12, %22 : vector<512x128xf32>
    %cst_14 = arith.constant dense<0.000000e+00> : vector<128xf32>
    %24 = vector.multi_reduction <add>, %23, %cst_14 [0] : vector<512x128xf32> to vector<128xf32>
    %25 = vector.shape_cast %24 : vector<128xf32> to vector<1x128xf32>
    %26 = arith.addf %20, %25 : vector<1x128xf32>
    %c0_15 = arith.constant 0 : index
    %c0_16 = arith.constant 0 : index
    %27 = vector.load %arg7[%c0_15, %c0_16] : memref<1x128xf32, #tpu.memory_space<vmem>>, vector<1x128xf32>
    tpu.vector_store %arg7[%c0_15, %c0_16], %26 {strides = array<i32>} : memref<1x128xf32, #tpu.memory_space<vmem>>, vector<1x128xf32>,
    %c0_i32_17 = arith.constant 0 : i32
    %28 = arith.cmpi eq, %arg0, %c0_i32_17 : i32
    %29 = arith.extui %28 : i1 to i32
    %c0_i32_18 = arith.constant 0 : i32
    %30 = arith.cmpi ne, %29, %c0_i32_18 : i32
    scf.if %30 {
      %c0_19 = arith.constant 0 : index
      %c0_20 = arith.constant 0 : index
      %31 = vector.load %arg6[%c0_19, %c0_20] : memref<1x128xf32, #tpu.memory_space<vmem>>, vector<1x128xf32>
      %32 = vector.shape_cast %31 : vector<1x128xf32> to vector<1x1x128xf32>
      %cst_21 = arith.constant dense<0.000000e+00> : vector<1xf32>
      %33 = vector.multi_reduction <add>, %32, %cst_21 [1, 2] : vector<1x1x128xf32> to vector<1xf32>
      %34 = vector.shape_cast %33 : vector<1xf32> to vector<1x1x1xf32>
      %35 = vector.extract %34[0, 0, 0] : f32 from vector<1x1x1xf32>
      %36 = vector.broadcast %35 : f32 to vector<1x1xf32>
      %c0_22 = arith.constant 0 : index
      %c0_23 = arith.constant 0 : index
      %37 = vector.load %arg4[%c0_22, %c0_23] : memref<1x1xf32, #tpu.memory_space<vmem>>, vector<1x1xf32>
      tpu.vector_store %arg4[%c0_22, %c0_23], %36 {strides = array<i32>} : memref<1x1xf32, #tpu.memory_space<vmem>>, vector<1x1xf32>,
      %38 = tpu.iota {dimensions = array<i32: 1>} : vector<1x128xi32>
      %c100_i32 = arith.constant 100 : i32
      %39 = vector.broadcast %c100_i32 : i32 to vector<1x128xi32>
      %40 = arith.cmpi slt, %38, %39 : vector<1x128xi32>
      %c0_24 = arith.constant 0 : index
      %c0_25 = arith.constant 0 : index
      %41 = vector.load %arg7[%c0_24, %c0_25] : memref<1x128xf32, #tpu.memory_space<vmem>>, vector<1x128xf32>
      %cst_26 = arith.constant 2.000000e+02 : f32
      %42 = vector.broadcast %cst_26 : f32 to vector<1x128xf32>
      %43 = arith.subf %41, %42 : vector<1x128xf32>
      %cst_27 = arith.constant 0.000000e+00 : f32
      %44 = vector.broadcast %cst_27 : f32 to vector<1x128xf32>
      %45 = arith.select %40, %43, %44 : vector<1x128xi1>, vector<1x128xf32>
      %46 = arith.mulf %45, %45 : vector<1x128xf32>
      %47 = vector.shape_cast %46 : vector<1x128xf32> to vector<1x1x128xf32>
      %cst_28 = arith.constant dense<0.000000e+00> : vector<1xf32>
      %48 = vector.multi_reduction <add>, %47, %cst_28 [1, 2] : vector<1x1x128xf32> to vector<1xf32>
      %49 = vector.shape_cast %48 : vector<1xf32> to vector<1x1x1xf32>
      %50 = vector.extract %49[0, 0, 0] : f32 from vector<1x1x1xf32>
      %51 = vector.broadcast %50 : f32 to vector<1x1xf32>
      %c0_29 = arith.constant 0 : index
      %c0_30 = arith.constant 0 : index
      %52 = vector.load %arg5[%c0_29, %c0_30] : memref<1x1xf32, #tpu.memory_space<vmem>>, vector<1x1xf32>
      tpu.vector_store %arg5[%c0_29, %c0_30], %51 {strides = array<i32>} : memref<1x1xf32, #tpu.memory_space<vmem>>, vector<1x1xf32>,
    } else {
    }
    return
  }
  func.func @transform_0(%arg0: i32) -> (i32, i32) {
    %c0_i32 = arith.constant 0 : i32
    %c0_i32_0 = arith.constant 0 : i32
    return %arg0, %c0_i32 : i32, i32
  }
  func.func @transform_1(%arg0: i32) -> (i32, i32) {
    %c0_i32 = arith.constant 0 : i32
    %c0_i32_0 = arith.constant 0 : i32
    return %arg0, %c0_i32 : i32, i32
  }
  func.func @transform_2(%arg0: i32) -> (i32, i32) {
    %c0_i32 = arith.constant 0 : i32
    %c0_i32_0 = arith.constant 0 : i32
    return %arg0, %c0_i32 : i32, i32
  }
  func.func @transform_3(%arg0: i32) -> (i32, i32) {
    %c0_i32 = arith.constant 0 : i32
    %c0_i32_0 = arith.constant 0 : i32
    %c0_i32_1 = arith.constant 0 : i32
    return %c0_i32, %c0_i32_0 : i32, i32
  }
  func.func @transform_4(%arg0: i32) -> (i32, i32) {
    %c0_i32 = arith.constant 0 : i32
    %c0_i32_0 = arith.constant 0 : i32
    %c0_i32_1 = arith.constant 0 : i32
    return %c0_i32, %c0_i32_0 : i32, i32
  }
}

</mosaic_0001>

<llo_original>
// kernel: tpu_custom_call.1
$region0: #{tpu_custom_call.1}
  #allocation0 [shape = 'u32[]', space=smem, size = 0x4, offset = 0x4, fixed_abs, tag = 'smem constant byte address 0x4 - core index']
  #allocation1 [shape = 'u32[144,128]{1,0:T(1,128)}', space=vmem, size = 0x12000, scoped, tag = 'internal scratch']
  #allocation2 [shape = 'f32[1,128]{1,0:T(1,128)}', space=vmem, size = 0x200, scoped, tag = 'scratch operand']
  #allocation3 [shape = 'f32[1,128]{1,0:T(1,128)}', space=vmem, size = 0x200, scoped, tag = 'scratch operand']
  %s0 = inlined_call_operand.vmem [shape: f32[512,128], index: 0, kind: input, shape index: {}]
  %s1 = inlined_call_operand.hbm [shape: f32[512,128], index: 1, kind: input, shape index: {}]
  %s2 = inlined_call_operand.vmem [shape: f32[512,1], index: 2, kind: input, shape index: {}]
  %s3 = inlined_call_operand.hbm [shape: f32[1,1], index: 3, kind: output, shape index: {0}]
  %s4 = inlined_call_operand.hbm [shape: f32[1,1], index: 4, kind: output, shape index: {1}]
  %5 = xla_tuple %s3, %s4
  %s6 = sld [smem:[#allocation0]]
  $region42: #{tpu_custom_call.1} parent=0
    _
  %s8 = ssub.s32 1, %s6
  %s9 = scalar_select 0, %s8, %s6
  $region1: #{tpu_custom_call.1} parent=0
    #allocation4 [shape = 'u8[262144]{0}', space=vmem, size = 0x40000, scoped, tag = 'input window, operand 1, single buffered']
    #allocation5 [shape = 's32[1]{0}', space=sflag, size = 0x4, scoped, tag = 'scoped memory for tpu_custom_call.1']
    #allocation6 [shape = 's32[1]{0}', space=sflag, size = 0x4, scoped, tag = 'scoped memory for tpu_custom_call.1']
    #allocation7 [shape = 'u8[512]{0}', space=vmem, size = 0x400, scoped, tag = 'output window, operand 0, single buffered']
    #allocation8 [shape = 'u8[512]{0}', space=vmem, size = 0x400, scoped, tag = 'output window, operand 1, single buffered']
    #allocation9 [shape = 's32[1]{0}', space=sflag, size = 0x4, scoped, tag = 'scoped memory for tpu_custom_call.1']
    %10 = vsyncpa [#allocation5], 0
    %11 = vsyncpa [#allocation6], 0
    %12 = vsyncpa [#allocation9], 0
    // Predicated region
    $region2: #{tpu_custom_call.1} parent=1 // pred_check
      _
    $region3: #{tpu_custom_call.1} parent=1 // pred_check_branch
      %14 = sbr.rel (0) target = $region5
    $region4: #{tpu_custom_call.1} parent=1 // pred_region
      _
    $region5: #{tpu_custom_call.1} parent=1 // pred_fallthru
      _
    // Predicated region
    $region6: #{tpu_custom_call.1} parent=1 // pred_check
      _
    $region7: #{tpu_custom_call.1} parent=1 // pred_check_branch
      %16 = sbr.rel (0) target = $region9
    $region8: #{tpu_custom_call.1} parent=1 // pred_region
      %s18 = ssub.s32 8192, 8192
      %19 = vsyncadd [#allocation5], %s18
      %s20 = sshll.u32 [#allocation4], 4
      %s21 = int_to_ptr.vmem [resolvable:$true] %s20
      %26 = dma.hbm_to_vmem [thread:$0]  %s1, 8192, %s21, [#allocation5], 128, 128, 8
    $region9: #{tpu_custom_call.1} parent=1 // pred_fallthru
      _
    // Predicated region
    $region10: #{tpu_custom_call.1} parent=1 // pred_check
      _
    $region11: #{tpu_custom_call.1} parent=1 // pred_check_branch
      %28 = sbr.rel (0) target = $region13
    $region12: #{tpu_custom_call.1} parent=1 // pred_region
      _
    $region13: #{tpu_custom_call.1} parent=1 // pred_fallthru
      _
    // Predicated region
    $region14: #{tpu_custom_call.1} parent=1 // pred_check
      _
    $region15: #{tpu_custom_call.1} parent=1 // pred_check_branch
      %30 = sbr.rel (0) target = $region17
    $region16: #{tpu_custom_call.1} parent=1 // pred_region
      %31 = dma.done [#allocation5], 8192
    $region17: #{tpu_custom_call.1} parent=1 // pred_fallthru
      _
    %p32 = scmp.eq.s32.totalorder 0, 0
    // Predicated region
    $region18: #{tpu_custom_call.1} parent=1 // pred_check
      %p33 = pneg %p32
    $region19: #{tpu_custom_call.1} parent=1 // pred_check_branch
      %35 = sbr.rel (%p33) target = $region21
    $region20: #{tpu_custom_call.1} parent=1 // pred_region
      %36 = vst [vmem:[#allocation2] sm:$0x1] 0.0
      %37 = vst [vmem:[#allocation3] sm:$0x1] 0.0
    $region21: #{tpu_custom_call.1} parent=1 // pred_fallthru
      _
    %v38 = vld [vmem:[%s0] sm:$0xff]
    %v39 = vld [vmem:[%s0 + $0x8] sm:$0xff]
    %v40 = vld [vmem:[%s0 + $0x10] sm:$0xff]
    %v41 = vld [vmem:[%s0 + $0x18] sm:$0xff]
    %v42 = vld [vmem:[%s0 + $0x20] sm:$0xff]
    %v43 = vld [vmem:[%s0 + $0x28] sm:$0xff]
    %v44 = vld [vmem:[%s0 + $0x30] sm:$0xff]
    %v45 = vld [vmem:[%s0 + $0x38] sm:$0xff]
    %v46 = vld [vmem:[%s0 + $0x40] sm:$0xff]
    %v47 = vld [vmem:[%s0 + $0x48] sm:$0xff]
    %v48 = vld [vmem:[%s0 + $0x50] sm:$0xff]
    %v49 = vld [vmem:[%s0 + $0x58] sm:$0xff]
    %v50 = vld [vmem:[%s0 + $0x60] sm:$0xff]
    %v51 = vld [vmem:[%s0 + $0x68] sm:$0xff]
    %v52 = vld [vmem:[%s0 + $0x70] sm:$0xff]
    %v53 = vld [vmem:[%s0 + $0x78] sm:$0xff]
    %v54 = vld [vmem:[%s0 + $0x80] sm:$0xff]
    %v55 = vld [vmem:[%s0 + $0x88] sm:$0xff]
    %v56 = vld [vmem:[%s0 + $0x90] sm:$0xff]
    %v57 = vld [vmem:[%s0 + $0x98] sm:$0xff]
    %v58 = vld [vmem:[%s0 + $0xa0] sm:$0xff]
    %v59 = vld [vmem:[%s0 + $0xa8] sm:$0xff]
    %v60 = vld [vmem:[%s0 + $0xb0] sm:$0xff]
    %v61 = vld [vmem:[%s0 + $0xb8] sm:$0xff]
    %v62 = vld [vmem:[%s0 + $0xc0] sm:$0xff]
    %v63 = vld [vmem:[%s0 + $0xc8] sm:$0xff]
    %v64 = vld [vmem:[%s0 + $0xd0] sm:$0xff]
    %v65 = vld [vmem:[%s0 + $0xd8] sm:$0xff]
    %v66 = vld [vmem:[%s0 + $0xe0] sm:$0xff]
    %v67 = vld [vmem:[%s0 + $0xe8] sm:$0xff]
    %v68 = vld [vmem:[%s0 + $0xf0] sm:$0xff]
    %v69 = vld [vmem:[%s0 + $0xf8] sm:$0xff]
    %v70 = vld [vmem:[%s0 + $0x100] sm:$0xff]
    %v71 = vld [vmem:[%s0 + $0x108] sm:$0xff]
    %v72 = vld [vmem:[%s0 + $0x110] sm:$0xff]
    %v73 = vld [vmem:[%s0 + $0x118] sm:$0xff]
    %v74 = vld [vmem:[%s0 + $0x120] sm:$0xff]
    %v75 = vld [vmem:[%s0 + $0x128] sm:$0xff]
    %v76 = vld [vmem:[%s0 + $0x130] sm:$0xff]
    %v77 = vld [vmem:[%s0 + $0x138] sm:$0xff]
    %v78 = vld [vmem:[%s0 + $0x140] sm:$0xff]
    %v79 = vld [vmem:[%s0 + $0x148] sm:$0xff]
    %v80 = vld [vmem:[%s0 + $0x150] sm:$0xff]
    %v81 = vld [vmem:[%s0 + $0x158] sm:$0xff]
    %v82 = vld [vmem:[%s0 + $0x160] sm:$0xff]
    %v83 = vld [vmem:[%s0 + $0x168] sm:$0xff]
    %v84 = vld [vmem:[%s0 + $0x170] sm:$0xff]
    %v85 = vld [vmem:[%s0 + $0x178] sm:$0xff]
    %v86 = vld [vmem:[%s0 + $0x180] sm:$0xff]
    %v87 = vld [vmem:[%s0 + $0x188] sm:$0xff]
    %v88 = vld [vmem:[%s0 + $0x190] sm:$0xff]
    %v89 = vld [vmem:[%s0 + $0x198] sm:$0xff]
    %v90 = vld [vmem:[%s0 + $0x1a0] sm:$0xff]
    %v91 = vld [vmem:[%s0 + $0x1a8] sm:$0xff]
    %v92 = vld [vmem:[%s0 + $0x1b0] sm:$0xff]
    %v93 = vld [vmem:[%s0 + $0x1b8] sm:$0xff]
    %v94 = vld [vmem:[%s0 + $0x1c0] sm:$0xff]
    %v95 = vld [vmem:[%s0 + $0x1c8] sm:$0xff]
    %v96 = vld [vmem:[%s0 + $0x1d0] sm:$0xff]
    %v97 = vld [vmem:[%s0 + $0x1d8] sm:$0xff]
    %v98 = vld [vmem:[%s0 + $0x1e0] sm:$0xff]
    %v99 = vld [vmem:[%s0 + $0x1e8] sm:$0xff]
    %v100 = vld [vmem:[%s0 + $0x1f0] sm:$0xff]
    %v101 = vld [vmem:[%s0 + $0x1f8] sm:$0xff]
    %102 = vmax.xlane.f32.xlu0 %v38
    %v103 = vpop.xlane.xlu0 %102
    %104 = vmax.xlane.f32.xlu0 %v39
    %v105 = vpop.xlane.xlu0 %104
    %106 = vmax.xlane.f32.xlu0 %v40
    %v107 = vpop.xlane.xlu0 %106
    %108 = vmax.xlane.f32.xlu0 %v41
    %v109 = vpop.xlane.xlu0 %108
    %110 = vmax.xlane.f32.xlu0 %v42
    %v111 = vpop.xlane.xlu0 %110
    %112 = vmax.xlane.f32.xlu0 %v43
    %v113 = vpop.xlane.xlu0 %112
    %114 = vmax.xlane.f32.xlu0 %v44
    %v115 = vpop.xlane.xlu0 %114
    %116 = vmax.xlane.f32.xlu0 %v45
    %v117 = vpop.xlane.xlu0 %116
    %118 = vmax.xlane.f32.xlu0 %v46
    %v119 = vpop.xlane.xlu0 %118
    %120 = vmax.xlane.f32.xlu0 %v47
    %v121 = vpop.xlane.xlu0 %120
    %122 = vmax.xlane.f32.xlu0 %v48
    %v123 = vpop.xlane.xlu0 %122
    %124 = vmax.xlane.f32.xlu0 %v49
    %v125 = vpop.xlane.xlu0 %124
    %126 = vmax.xlane.f32.xlu0 %v50
    %v127 = vpop.xlane.xlu0 %126
    %128 = vmax.xlane.f32.xlu0 %v51
    %v129 = vpop.xlane.xlu0 %128
    %130 = vmax.xlane.f32.xlu0 %v52
    %v131 = vpop.xlane.xlu0 %130
    %132 = vmax.xlane.f32.xlu0 %v53
    %v133 = vpop.xlane.xlu0 %132
    %134 = vmax.xlane.f32.xlu0 %v54
    %v135 = vpop.xlane.xlu0 %134
    %136 = vmax.xlane.f32.xlu0 %v55
    %v137 = vpop.xlane.xlu0 %136
    %138 = vmax.xlane.f32.xlu0 %v56
    %v139 = vpop.xlane.xlu0 %138
    %140 = vmax.xlane.f32.xlu0 %v57
    %v141 = vpop.xlane.xlu0 %140
    %142 = vmax.xlane.f32.xlu0 %v58
    %v143 = vpop.xlane.xlu0 %142
    %144 = vmax.xlane.f32.xlu0 %v59
    %v145 = vpop.xlane.xlu0 %144
    %146 = vmax.xlane.f32.xlu0 %v60
    %v147 = vpop.xlane.xlu0 %146
    %148 = vmax.xlane.f32.xlu0 %v61
    %v149 = vpop.xlane.xlu0 %148
    %150 = vmax.xlane.f32.xlu0 %v62
    %v151 = vpop.xlane.xlu0 %150
    %152 = vmax.xlane.f32.xlu0 %v63
    %v153 = vpop.xlane.xlu0 %152
    %154 = vmax.xlane.f32.xlu0 %v64
    %v155 = vpop.xlane.xlu0 %154
    %156 = vmax.xlane.f32.xlu0 %v65
    %v157 = vpop.xlane.xlu0 %156
    %158 = vmax.xlane.f32.xlu0 %v66
    %v159 = vpop.xlane.xlu0 %158
    %160 = vmax.xlane.f32.xlu0 %v67
    %v161 = vpop.xlane.xlu0 %160
    %162 = vmax.xlane.f32.xlu0 %v68
    %v163 = vpop.xlane.xlu0 %162
    %164 = vmax.xlane.f32.xlu0 %v69
    %v165 = vpop.xlane.xlu0 %164
    %166 = vmax.xlane.f32.xlu0 %v70
    %v167 = vpop.xlane.xlu0 %166
    %168 = vmax.xlane.f32.xlu0 %v71
    %v169 = vpop.xlane.xlu0 %168
    %170 = vmax.xlane.f32.xlu0 %v72
    %v171 = vpop.xlane.xlu0 %170
    %172 = vmax.xlane.f32.xlu0 %v73
    %v173 = vpop.xlane.xlu0 %172
    %174 = vmax.xlane.f32.xlu0 %v74
    %v175 = vpop.xlane.xlu0 %174
    %176 = vmax.xlane.f32.xlu0 %v75
    %v177 = vpop.xlane.xlu0 %176
    %178 = vmax.xlane.f32.xlu0 %v76
    %v179 = vpop.xlane.xlu0 %178
    %180 = vmax.xlane.f32.xlu0 %v77
    %v181 = vpop.xlane.xlu0 %180
    %182 = vmax.xlane.f32.xlu0 %v78
    %v183 = vpop.xlane.xlu0 %182
    %184 = vmax.xlane.f32.xlu0 %v79
    %v185 = vpop.xlane.xlu0 %184
    %186 = vmax.xlane.f32.xlu0 %v80
    %v187 = vpop.xlane.xlu0 %186
    %188 = vmax.xlane.f32.xlu0 %v81
    %v189 = vpop.xlane.xlu0 %188
    %190 = vmax.xlane.f32.xlu0 %v82
    %v191 = vpop.xlane.xlu0 %190
    %192 = vmax.xlane.f32.xlu0 %v83
    %v193 = vpop.xlane.xlu0 %192
    %194 = vmax.xlane.f32.xlu0 %v84
    %v195 = vpop.xlane.xlu0 %194
    %196 = vmax.xlane.f32.xlu0 %v85
    %v197 = vpop.xlane.xlu0 %196
    %198 = vmax.xlane.f32.xlu0 %v86
    %v199 = vpop.xlane.xlu0 %198
    %200 = vmax.xlane.f32.xlu0 %v87
    %v201 = vpop.xlane.xlu0 %200
    %202 = vmax.xlane.f32.xlu0 %v88
    %v203 = vpop.xlane.xlu0 %202
    %204 = vmax.xlane.f32.xlu0 %v89
    %v205 = vpop.xlane.xlu0 %204
    %206 = vmax.xlane.f32.xlu0 %v90
    %v207 = vpop.xlane.xlu0 %206
    %208 = vmax.xlane.f32.xlu0 %v91
    %v209 = vpop.xlane.xlu0 %208
    %210 = vmax.xlane.f32.xlu0 %v92
    %v211 = vpop.xlane.xlu0 %210
    %212 = vmax.xlane.f32.xlu0 %v93
    %v213 = vpop.xlane.xlu0 %212
    %214 = vmax.xlane.f32.xlu0 %v94
    %v215 = vpop.xlane.xlu0 %214
    %216 = vmax.xlane.f32.xlu0 %v95
    %v217 = vpop.xlane.xlu0 %216
    %218 = vmax.xlane.f32.xlu0 %v96
    %v219 = vpop.xlane.xlu0 %218
    %220 = vmax.xlane.f32.xlu0 %v97
    %v221 = vpop.xlane.xlu0 %220
    %222 = vmax.xlane.f32.xlu0 %v98
    %v223 = vpop.xlane.xlu0 %222
    %224 = vmax.xlane.f32.xlu0 %v99
    %v225 = vpop.xlane.xlu0 %224
    %226 = vmax.xlane.f32.xlu0 %v100
    %v227 = vpop.xlane.xlu0 %226
    %228 = vmax.xlane.f32.xlu0 %v101
    %v229 = vpop.xlane.xlu0 %228
    %v230 = vsub.f32 %v38, %v103
    %v231 = vsub.f32 %v39, %v105
    %v232 = vsub.f32 %v40, %v107
    %v233 = vsub.f32 %v41, %v109
    %v234 = vsub.f32 %v42, %v111
    %v235 = vsub.f32 %v43, %v113
    %v236 = vsub.f32 %v44, %v115
    %v237 = vsub.f32 %v45, %v117
    %v238 = vsub.f32 %v46, %v119
    %v239 = vsub.f32 %v47, %v121
    %v240 = vsub.f32 %v48, %v123
    %v241 = vsub.f32 %v49, %v125
    %v242 = vsub.f32 %v50, %v127
    %v243 = vsub.f32 %v51, %v129
    %v244 = vsub.f32 %v52, %v131
    %v245 = vsub.f32 %v53, %v133
    %v246 = vsub.f32 %v54, %v135
    %v247 = vsub.f32 %v55, %v137
    %v248 = vsub.f32 %v56, %v139
    %v249 = vsub.f32 %v57, %v141
    %v250 = vsub.f32 %v58, %v143
    %v251 = vsub.f32 %v59, %v145
    %v252 = vsub.f32 %v60, %v147
    %v253 = vsub.f32 %v61, %v149
    %v254 = vsub.f32 %v62, %v151
    %v255 = vsub.f32 %v63, %v153
    %v256 = vsub.f32 %v64, %v155
    %v257 = vsub.f32 %v65, %v157
    %v258 = vsub.f32 %v66, %v159
    %v259 = vsub.f32 %v67, %v161
    %v260 = vsub.f32 %v68, %v163
    %v261 = vsub.f32 %v69, %v165
    %v262 = vsub.f32 %v70, %v167
    %v263 = vsub.f32 %v71, %v169
    %v264 = vsub.f32 %v72, %v171
    %v265 = vsub.f32 %v73, %v173
    %v266 = vsub.f32 %v74, %v175
    %v267 = vsub.f32 %v75, %v177
    %v268 = vsub.f32 %v76, %v179
    %v269 = vsub.f32 %v77, %v181
    %v270 = vsub.f32 %v78, %v183
    %v271 = vsub.f32 %v79, %v185
    %v272 = vsub.f32 %v80, %v187
    %v273 = vsub.f32 %v81, %v189
    %v274 = vsub.f32 %v82, %v191
    %v275 = vsub.f32 %v83, %v193
    %v276 = vsub.f32 %v84, %v195
    %v277 = vsub.f32 %v85, %v197
    %v278 = vsub.f32 %v86, %v199
    %v279 = vsub.f32 %v87, %v201
    %v280 = vsub.f32 %v88, %v203
    %v281 = vsub.f32 %v89, %v205
    %v282 = vsub.f32 %v90, %v207
    %v283 = vsub.f32 %v91, %v209
    %v284 = vsub.f32 %v92, %v211
    %v285 = vsub.f32 %v93, %v213
    %v286 = vsub.f32 %v94, %v215
    %v287 = vsub.f32 %v95, %v217
    %v288 = vsub.f32 %v96, %v219
    %v289 = vsub.f32 %v97, %v221
    %v290 = vsub.f32 %v98, %v223
    %v291 = vsub.f32 %v99, %v225
    %v292 = vsub.f32 %v100, %v227
    %v293 = vsub.f32 %v101, %v229
    %v294 = vmul.f32 %v230, 1.442695
    %v295 = vpow.pop %v294
    %v296 = vmul.f32 %v231, 1.442695
    %v297 = vpow.pop %v296
    %v298 = vmul.f32 %v232, 1.442695
    %v299 = vpow.pop %v298
    %v300 = vmul.f32 %v233, 1.442695
    %v301 = vpow.pop %v300
    %v302 = vmul.f32 %v234, 1.442695
    %v303 = vpow.pop %v302
    %v304 = vmul.f32 %v235, 1.442695
    %v305 = vpow.pop %v304
    %v306 = vmul.f32 %v236, 1.442695
    %v307 = vpow.pop %v306
    %v308 = vmul.f32 %v237, 1.442695
    %v309 = vpow.pop %v308
    %v310 = vmul.f32 %v238, 1.442695
    %v311 = vpow.pop %v310
    %v312 = vmul.f32 %v239, 1.442695
    %v313 = vpow.pop %v312
    %v314 = vmul.f32 %v240, 1.442695
    %v315 = vpow.pop %v314
    %v316 = vmul.f32 %v241, 1.442695
    %v317 = vpow.pop %v316
    %v318 = vmul.f32 %v242, 1.442695
    %v319 = vpow.pop %v318
    %v320 = vmul.f32 %v243, 1.442695
    %v321 = vpow.pop %v320
    %v322 = vmul.f32 %v244, 1.442695
    %v323 = vpow.pop %v322
    %v324 = vmul.f32 %v245, 1.442695
    %v325 = vpow.pop %v324
    %v326 = vmul.f32 %v246, 1.442695
    %v327 = vpow.pop %v326
    %v328 = vmul.f32 %v247, 1.442695
    %v329 = vpow.pop %v328
    %v330 = vmul.f32 %v248, 1.442695
    %v331 = vpow.pop %v330
    %v332 = vmul.f32 %v249, 1.442695
    %v333 = vpow.pop %v332
    %v334 = vmul.f32 %v250, 1.442695
    %v335 = vpow.pop %v334
    %v336 = vmul.f32 %v251, 1.442695
    %v337 = vpow.pop %v336
    %v338 = vmul.f32 %v252, 1.442695
    %v339 = vpow.pop %v338
    %v340 = vmul.f32 %v253, 1.442695
    %v341 = vpow.pop %v340
    %v342 = vmul.f32 %v254, 1.442695
    %v343 = vpow.pop %v342
    %v344 = vmul.f32 %v255, 1.442695
    %v345 = vpow.pop %v344
    %v346 = vmul.f32 %v256, 1.442695
    %v347 = vpow.pop %v346
    %v348 = vmul.f32 %v257, 1.442695
    %v349 = vpow.pop %v348
    %v350 = vmul.f32 %v258, 1.442695
    %v351 = vpow.pop %v350
    %v352 = vmul.f32 %v259, 1.442695
    %v353 = vpow.pop %v352
    %v354 = vmul.f32 %v260, 1.442695
    %v355 = vpow.pop %v354
    %v356 = vmul.f32 %v261, 1.442695
    %v357 = vpow.pop %v356
    %v358 = vmul.f32 %v262, 1.442695
    %v359 = vpow.pop %v358
    %v360 = vmul.f32 %v263, 1.442695
    %v361 = vpow.pop %v360
    %v362 = vmul.f32 %v264, 1.442695
    %v363 = vpow.pop %v362
    %v364 = vmul.f32 %v265, 1.442695
    %v365 = vpow.pop %v364
    %v366 = vmul.f32 %v266, 1.442695
    %v367 = vpow.pop %v366
    %v368 = vmul.f32 %v267, 1.442695
    %v369 = vpow.pop %v368
    %v370 = vmul.f32 %v268, 1.442695
    %v371 = vpow.pop %v370
    %v372 = vmul.f32 %v269, 1.442695
    %v373 = vpow.pop %v372
    %v374 = vmul.f32 %v270, 1.442695
    %v375 = vpow.pop %v374
    %v376 = vmul.f32 %v271, 1.442695
    %v377 = vpow.pop %v376
    %v378 = vmul.f32 %v272, 1.442695
    %v379 = vpow.pop %v378
    %v380 = vmul.f32 %v273, 1.442695
    %v381 = vpow.pop %v380
    %v382 = vmul.f32 %v274, 1.442695
    %v383 = vpow.pop %v382
    %v384 = vmul.f32 %v275, 1.442695
    %v385 = vpow.pop %v384
    %v386 = vmul.f32 %v276, 1.442695
    %v387 = vpow.pop %v386
    %v388 = vmul.f32 %v277, 1.442695
    %v389 = vpow.pop %v388
    %v390 = vmul.f32 %v278, 1.442695
    %v391 = vpow.pop %v390
    %v392 = vmul.f32 %v279, 1.442695
    %v393 = vpow.pop %v392
    %v394 = vmul.f32 %v280, 1.442695
    %v395 = vpow.pop %v394
    %v396 = vmul.f32 %v281, 1.442695
    %v397 = vpow.pop %v396
    %v398 = vmul.f32 %v282, 1.442695
    %v399 = vpow.pop %v398
    %v400 = vmul.f32 %v283, 1.442695
    %v401 = vpow.pop %v400
    %v402 = vmul.f32 %v284, 1.442695
    %v403 = vpow.pop %v402
    %v404 = vmul.f32 %v285, 1.442695
    %v405 = vpow.pop %v404
    %v406 = vmul.f32 %v286, 1.442695
    %v407 = vpow.pop %v406
    %v408 = vmul.f32 %v287, 1.442695
    %v409 = vpow.pop %v408
    %v410 = vmul.f32 %v288, 1.442695
    %v411 = vpow.pop %v410
    %v412 = vmul.f32 %v289, 1.442695
    %v413 = vpow.pop %v412
    %v414 = vmul.f32 %v290, 1.442695
    %v415 = vpow.pop %v414
    %v416 = vmul.f32 %v291, 1.442695
    %v417 = vpow.pop %v416
    %v418 = vmul.f32 %v292, 1.442695
    %v419 = vpow.pop %v418
    %v420 = vmul.f32 %v293, 1.442695
    %v421 = vpow.pop %v420
    %422 = vadd.xlane.f32.xlu0 %v295
    %v423 = vpop.xlane.xlu0 %422
    %424 = vadd.xlane.f32.xlu0 %v297
    %v425 = vpop.xlane.xlu0 %424
    %426 = vadd.xlane.f32.xlu0 %v299
    %v427 = vpop.xlane.xlu0 %426
    %428 = vadd.xlane.f32.xlu0 %v301
    %v429 = vpop.xlane.xlu0 %428
    %430 = vadd.xlane.f32.xlu0 %v303
    %v431 = vpop.xlane.xlu0 %430
    %432 = vadd.xlane.f32.xlu0 %v305
    %v433 = vpop.xlane.xlu0 %432
    %434 = vadd.xlane.f32.xlu0 %v307
    %v435 = vpop.xlane.xlu0 %434
    %436 = vadd.xlane.f32.xlu0 %v309
    %v437 = vpop.xlane.xlu0 %436
    %438 = vadd.xlane.f32.xlu0 %v311
    %v439 = vpop.xlane.xlu0 %438
    %440 = vadd.xlane.f32.xlu0 %v313
    %v441 = vpop.xlane.xlu0 %440
    %442 = vadd.xlane.f32.xlu0 %v315
    %v443 = vpop.xlane.xlu0 %442
    %444 = vadd.xlane.f32.xlu0 %v317
    %v445 = vpop.xlane.xlu0 %444
    %446 = vadd.xlane.f32.xlu0 %v319
    %v447 = vpop.xlane.xlu0 %446
    %448 = vadd.xlane.f32.xlu0 %v321
    %v449 = vpop.xlane.xlu0 %448
    %450 = vadd.xlane.f32.xlu0 %v323
    %v451 = vpop.xlane.xlu0 %450
    %452 = vadd.xlane.f32.xlu0 %v325
    %v453 = vpop.xlane.xlu0 %452
    %454 = vadd.xlane.f32.xlu0 %v327
    %v455 = vpop.xlane.xlu0 %454
    %456 = vadd.xlane.f32.xlu0 %v329
    %v457 = vpop.xlane.xlu0 %456
    %458 = vadd.xlane.f32.xlu0 %v331
    %v459 = vpop.xlane.xlu0 %458
    %460 = vadd.xlane.f32.xlu0 %v333
    %v461 = vpop.xlane.xlu0 %460
    %462 = vadd.xlane.f32.xlu0 %v335
    %v463 = vpop.xlane.xlu0 %462
    %464 = vadd.xlane.f32.xlu0 %v337
    %v465 = vpop.xlane.xlu0 %464
    %466 = vadd.xlane.f32.xlu0 %v339
    %v467 = vpop.xlane.xlu0 %466
    %468 = vadd.xlane.f32.xlu0 %v341
    %v469 = vpop.xlane.xlu0 %468
    %470 = vadd.xlane.f32.xlu0 %v343
    %v471 = vpop.xlane.xlu0 %470
    %472 = vadd.xlane.f32.xlu0 %v345
    %v473 = vpop.xlane.xlu0 %472
    %474 = vadd.xlane.f32.xlu0 %v347
    %v475 = vpop.xlane.xlu0 %474
    %476 = vadd.xlane.f32.xlu0 %v349
    %v477 = vpop.xlane.xlu0 %476
    %478 = vadd.xlane.f32.xlu0 %v351
    %v479 = vpop.xlane.xlu0 %478
    %480 = vadd.xlane.f32.xlu0 %v353
    %v481 = vpop.xlane.xlu0 %480
    %482 = vadd.xlane.f32.xlu0 %v355
    %v483 = vpop.xlane.xlu0 %482
    %484 = vadd.xlane.f32.xlu0 %v357
    %v485 = vpop.xlane.xlu0 %484
    %486 = vadd.xlane.f32.xlu0 %v359
    %v487 = vpop.xlane.xlu0 %486
    %488 = vadd.xlane.f32.xlu0 %v361
    %v489 = vpop.xlane.xlu0 %488
    %490 = vadd.xlane.f32.xlu0 %v363
    %v491 = vpop.xlane.xlu0 %490
    %492 = vadd.xlane.f32.xlu0 %v365
    %v493 = vpop.xlane.xlu0 %492
    %494 = vadd.xlane.f32.xlu0 %v367
    %v495 = vpop.xlane.xlu0 %494
    %496 = vadd.xlane.f32.xlu0 %v369
    %v497 = vpop.xlane.xlu0 %496
    %498 = vadd.xlane.f32.xlu0 %v371
    %v499 = vpop.xlane.xlu0 %498
    %500 = vadd.xlane.f32.xlu0 %v373
    %v501 = vpop.xlane.xlu0 %500
    %502 = vadd.xlane.f32.xlu0 %v375
    %v503 = vpop.xlane.xlu0 %502
    %504 = vadd.xlane.f32.xlu0 %v377
    %v505 = vpop.xlane.xlu0 %504
    %506 = vadd.xlane.f32.xlu0 %v379
    %v507 = vpop.xlane.xlu0 %506
    %508 = vadd.xlane.f32.xlu0 %v381
    %v509 = vpop.xlane.xlu0 %508
    %510 = vadd.xlane.f32.xlu0 %v383
    %v511 = vpop.xlane.xlu0 %510
    %512 = vadd.xlane.f32.xlu0 %v385
    %v513 = vpop.xlane.xlu0 %512
    %514 = vadd.xlane.f32.xlu0 %v387
    %v515 = vpop.xlane.xlu0 %514
    %516 = vadd.xlane.f32.xlu0 %v389
    %v517 = vpop.xlane.xlu0 %516
    %518 = vadd.xlane.f32.xlu0 %v391
    %v519 = vpop.xlane.xlu0 %518
    %520 = vadd.xlane.f32.xlu0 %v393
    %v521 = vpop.xlane.xlu0 %520
    %522 = vadd.xlane.f32.xlu0 %v395
    %v523 = vpop.xlane.xlu0 %522
    %524 = vadd.xlane.f32.xlu0 %v397
    %v525 = vpop.xlane.xlu0 %524
    %526 = vadd.xlane.f32.xlu0 %v399
    %v527 = vpop.xlane.xlu0 %526
    %528 = vadd.xlane.f32.xlu0 %v401
    %v529 = vpop.xlane.xlu0 %528
    %530 = vadd.xlane.f32.xlu0 %v403
    %v531 = vpop.xlane.xlu0 %530
    %532 = vadd.xlane.f32.xlu0 %v405
    %v533 = vpop.xlane.xlu0 %532
    %534 = vadd.xlane.f32.xlu0 %v407
    %v535 = vpop.xlane.xlu0 %534
    %536 = vadd.xlane.f32.xlu0 %v409
    %v537 = vpop.xlane.xlu0 %536
    %538 = vadd.xlane.f32.xlu0 %v411
    %v539 = vpop.xlane.xlu0 %538
    %540 = vadd.xlane.f32.xlu0 %v413
    %v541 = vpop.xlane.xlu0 %540
    %542 = vadd.xlane.f32.xlu0 %v415
    %v543 = vpop.xlane.xlu0 %542
    %544 = vadd.xlane.f32.xlu0 %v417
    %v545 = vpop.xlane.xlu0 %544
    %546 = vadd.xlane.f32.xlu0 %v419
    %v547 = vpop.xlane.xlu0 %546
    %548 = vadd.xlane.f32.xlu0 %v421
    %v549 = vpop.xlane.xlu0 %548
    %v550 = vrcp.pop %v423
    %v551 = vmul.f32 %v295, %v550
    %v552 = vrcp.pop %v425
    %v553 = vmul.f32 %v297, %v552
    %v554 = vrcp.pop %v427
    %v555 = vmul.f32 %v299, %v554
    %v556 = vrcp.pop %v429
    %v557 = vmul.f32 %v301, %v556
    %v558 = vrcp.pop %v431
    %v559 = vmul.f32 %v303, %v558
    %v560 = vrcp.pop %v433
    %v561 = vmul.f32 %v305, %v560
    %v562 = vrcp.pop %v435
    %v563 = vmul.f32 %v307, %v562
    %v564 = vrcp.pop %v437
    %v565 = vmul.f32 %v309, %v564
    %v566 = vrcp.pop %v439
    %v567 = vmul.f32 %v311, %v566
    %v568 = vrcp.pop %v441
    %v569 = vmul.f32 %v313, %v568
    %v570 = vrcp.pop %v443
    %v571 = vmul.f32 %v315, %v570
    %v572 = vrcp.pop %v445
    %v573 = vmul.f32 %v317, %v572
    %v574 = vrcp.pop %v447
    %v575 = vmul.f32 %v319, %v574
    %v576 = vrcp.pop %v449
    %v577 = vmul.f32 %v321, %v576
    %v578 = vrcp.pop %v451
    %v579 = vmul.f32 %v323, %v578
    %v580 = vrcp.pop %v453
    %v581 = vmul.f32 %v325, %v580
    %v582 = vrcp.pop %v455
    %v583 = vmul.f32 %v327, %v582
    %v584 = vrcp.pop %v457
    %v585 = vmul.f32 %v329, %v584
    %v586 = vrcp.pop %v459
    %v587 = vmul.f32 %v331, %v586
    %v588 = vrcp.pop %v461
    %v589 = vmul.f32 %v333, %v588
    %v590 = vrcp.pop %v463
    %v591 = vmul.f32 %v335, %v590
    %v592 = vrcp.pop %v465
    %v593 = vmul.f32 %v337, %v592
    %v594 = vrcp.pop %v467
    %v595 = vmul.f32 %v339, %v594
    %v596 = vrcp.pop %v469
    %v597 = vmul.f32 %v341, %v596
    %v598 = vrcp.pop %v471
    %v599 = vmul.f32 %v343, %v598
    %v600 = vrcp.pop %v473
    %v601 = vmul.f32 %v345, %v600
    %v602 = vrcp.pop %v475
    %v603 = vmul.f32 %v347, %v602
    %v604 = vrcp.pop %v477
    %v605 = vmul.f32 %v349, %v604
    %v606 = vrcp.pop %v479
    %v607 = vmul.f32 %v351, %v606
    %v608 = vrcp.pop %v481
    %v609 = vmul.f32 %v353, %v608
    %v610 = vrcp.pop %v483
    %v611 = vmul.f32 %v355, %v610
    %v612 = vrcp.pop %v485
    %v613 = vmul.f32 %v357, %v612
    %v614 = vrcp.pop %v487
    %v615 = vmul.f32 %v359, %v614
    %v616 = vrcp.pop %v489
    %v617 = vmul.f32 %v361, %v616
    %v618 = vrcp.pop %v491
    %v619 = vmul.f32 %v363, %v618
    %v620 = vrcp.pop %v493
    %v621 = vmul.f32 %v365, %v620
    %v622 = vrcp.pop %v495
    %v623 = vmul.f32 %v367, %v622
    %v624 = vrcp.pop %v497
    %v625 = vmul.f32 %v369, %v624
    %v626 = vrcp.pop %v499
    %v627 = vmul.f32 %v371, %v626
    %v628 = vrcp.pop %v501
    %v629 = vmul.f32 %v373, %v628
    %v630 = vrcp.pop %v503
    %v631 = vmul.f32 %v375, %v630
    %v632 = vrcp.pop %v505
    %v633 = vmul.f32 %v377, %v632
    %v634 = vrcp.pop %v507
    %v635 = vmul.f32 %v379, %v634
    %v636 = vrcp.pop %v509
    %v637 = vmul.f32 %v381, %v636
    %v638 = vrcp.pop %v511
    %v639 = vmul.f32 %v383, %v638
    %v640 = vrcp.pop %v513
    %v641 = vmul.f32 %v385, %v640
    %v642 = vrcp.pop %v515
    %v643 = vmul.f32 %v387, %v642
    %v644 = vrcp.pop %v517
    %v645 = vmul.f32 %v389, %v644
    %v646 = vrcp.pop %v519
    %v647 = vmul.f32 %v391, %v646
    %v648 = vrcp.pop %v521
    %v649 = vmul.f32 %v393, %v648
    %v650 = vrcp.pop %v523
    %v651 = vmul.f32 %v395, %v650
    %v652 = vrcp.pop %v525
    %v653 = vmul.f32 %v397, %v652
    %v654 = vrcp.pop %v527
    %v655 = vmul.f32 %v399, %v654
    %v656 = vrcp.pop %v529
    %v657 = vmul.f32 %v401, %v656
    %v658 = vrcp.pop %v531
    %v659 = vmul.f32 %v403, %v658
    %v660 = vrcp.pop %v533
    %v661 = vmul.f32 %v405, %v660
    %v662 = vrcp.pop %v535
    %v663 = vmul.f32 %v407, %v662
    %v664 = vrcp.pop %v537
    %v665 = vmul.f32 %v409, %v664
    %v666 = vrcp.pop %v539
    %v667 = vmul.f32 %v411, %v666
    %v668 = vrcp.pop %v541
    %v669 = vmul.f32 %v413, %v668
    %v670 = vrcp.pop %v543
    %v671 = vmul.f32 %v415, %v670
    %v672 = vrcp.pop %v545
    %v673 = vmul.f32 %v417, %v672
    %v674 = vrcp.pop %v547
    %v675 = vmul.f32 %v419, %v674
    %v676 = vrcp.pop %v549
    %v677 = vmul.f32 %v421, %v676
    %v678 = vld [vmem:[#allocation2] sm:$0x1]
    %v679 = vld [vmem:[#allocation4] sm:$0xff]
    %v680 = vld [vmem:[#allocation4 + $0x8] sm:$0xff]
    %v681 = vld [vmem:[#allocation4 + $0x10] sm:$0xff]
    %v682 = vld [vmem:[#allocation4 + $0x18] sm:$0xff]
    %v683 = vld [vmem:[#allocation4 + $0x20] sm:$0xff]
    %v684 = vld [vmem:[#allocation4 + $0x28] sm:$0xff]
    %v685 = vld [vmem:[#allocation4 + $0x30] sm:$0xff]
    %v686 = vld [vmem:[#allocation4 + $0x38] sm:$0xff]
    %v687 = vld [vmem:[#allocation4 + $0x40] sm:$0xff]
    %v688 = vld [vmem:[#allocation4 + $0x48] sm:$0xff]
    %v689 = vld [vmem:[#allocation4 + $0x50] sm:$0xff]
    %v690 = vld [vmem:[#allocation4 + $0x58] sm:$0xff]
    %v691 = vld [vmem:[#allocation4 + $0x60] sm:$0xff]
    %v692 = vld [vmem:[#allocation4 + $0x68] sm:$0xff]
    %v693 = vld [vmem:[#allocation4 + $0x70] sm:$0xff]
    %v694 = vld [vmem:[#allocation4 + $0x78] sm:$0xff]
    %v695 = vld [vmem:[#allocation4 + $0x80] sm:$0xff]
    %v696 = vld [vmem:[#allocation4 + $0x88] sm:$0xff]
    %v697 = vld [vmem:[#allocation4 + $0x90] sm:$0xff]
    %v698 = vld [vmem:[#allocation4 + $0x98] sm:$0xff]
    %v699 = vld [vmem:[#allocation4 + $0xa0] sm:$0xff]
    %v700 = vld [vmem:[#allocation4 + $0xa8] sm:$0xff]
    %v701 = vld [vmem:[#allocation4 + $0xb0] sm:$0xff]
    %v702 = vld [vmem:[#allocation4 + $0xb8] sm:$0xff]
    %v703 = vld [vmem:[#allocation4 + $0xc0] sm:$0xff]
    %v704 = vld [vmem:[#allocation4 + $0xc8] sm:$0xff]
    %v705 = vld [vmem:[#allocation4 + $0xd0] sm:$0xff]
    %v706 = vld [vmem:[#allocation4 + $0xd8] sm:$0xff]
    %v707 = vld [vmem:[#allocation4 + $0xe0] sm:$0xff]
    %v708 = vld [vmem:[#allocation4 + $0xe8] sm:$0xff]
    %v709 = vld [vmem:[#allocation4 + $0xf0] sm:$0xff]
    %v710 = vld [vmem:[#allocation4 + $0xf8] sm:$0xff]
    %v711 = vld [vmem:[#allocation4 + $0x100] sm:$0xff]
    %v712 = vld [vmem:[#allocation4 + $0x108] sm:$0xff]
    %v713 = vld [vmem:[#allocation4 + $0x110] sm:$0xff]
    %v714 = vld [vmem:[#allocation4 + $0x118] sm:$0xff]
    %v715 = vld [vmem:[#allocation4 + $0x120] sm:$0xff]
    %v716 = vld [vmem:[#allocation4 + $0x128] sm:$0xff]
    %v717 = vld [vmem:[#allocation4 + $0x130] sm:$0xff]
    %v718 = vld [vmem:[#allocation4 + $0x138] sm:$0xff]
    %v719 = vld [vmem:[#allocation4 + $0x140] sm:$0xff]
    %v720 = vld [vmem:[#allocation4 + $0x148] sm:$0xff]
    %v721 = vld [vmem:[#allocation4 + $0x150] sm:$0xff]
    %v722 = vld [vmem:[#allocation4 + $0x158] sm:$0xff]
    %v723 = vld [vmem:[#allocation4 + $0x160] sm:$0xff]
    %v724 = vld [vmem:[#allocation4 + $0x168] sm:$0xff]
    %v725 = vld [vmem:[#allocation4 + $0x170] sm:$0xff]
    %v726 = vld [vmem:[#allocation4 + $0x178] sm:$0xff]
    %v727 = vld [vmem:[#allocation4 + $0x180] sm:$0xff]
    %v728 = vld [vmem:[#allocation4 + $0x188] sm:$0xff]
    %v729 = vld [vmem:[#allocation4 + $0x190] sm:$0xff]
    %v730 = vld [vmem:[#allocation4 + $0x198] sm:$0xff]
    %v731 = vld [vmem:[#allocation4 + $0x1a0] sm:$0xff]
    %v732 = vld [vmem:[#allocation4 + $0x1a8] sm:$0xff]
    %v733 = vld [vmem:[#allocation4 + $0x1b0] sm:$0xff]
    %v734 = vld [vmem:[#allocation4 + $0x1b8] sm:$0xff]
    %v735 = vld [vmem:[#allocation4 + $0x1c0] sm:$0xff]
    %v736 = vld [vmem:[#allocation4 + $0x1c8] sm:$0xff]
    %v737 = vld [vmem:[#allocation4 + $0x1d0] sm:$0xff]
    %v738 = vld [vmem:[#allocation4 + $0x1d8] sm:$0xff]
    %v739 = vld [vmem:[#allocation4 + $0x1e0] sm:$0xff]
    %v740 = vld [vmem:[#allocation4 + $0x1e8] sm:$0xff]
    %v741 = vld [vmem:[#allocation4 + $0x1f0] sm:$0xff]
    %v742 = vld [vmem:[#allocation4 + $0x1f8] sm:$0xff]
    %v743 = vmul.f32 %v551, %v679
    %v744 = vmul.f32 %v553, %v680
    %v745 = vmul.f32 %v555, %v681
    %v746 = vmul.f32 %v557, %v682
    %v747 = vmul.f32 %v559, %v683
    %v748 = vmul.f32 %v561, %v684
    %v749 = vmul.f32 %v563, %v685
    %v750 = vmul.f32 %v565, %v686
    %v751 = vmul.f32 %v567, %v687
    %v752 = vmul.f32 %v569, %v688
    %v753 = vmul.f32 %v571, %v689
    %v754 = vmul.f32 %v573, %v690
    %v755 = vmul.f32 %v575, %v691
    %v756 = vmul.f32 %v577, %v692
    %v757 = vmul.f32 %v579, %v693
    %v758 = vmul.f32 %v581, %v694
    %v759 = vmul.f32 %v583, %v695
    %v760 = vmul.f32 %v585, %v696
    %v761 = vmul.f32 %v587, %v697
    %v762 = vmul.f32 %v589, %v698
    %v763 = vmul.f32 %v591, %v699
    %v764 = vmul.f32 %v593, %v700
    %v765 = vmul.f32 %v595, %v701
    %v766 = vmul.f32 %v597, %v702
    %v767 = vmul.f32 %v599, %v703
    %v768 = vmul.f32 %v601, %v704
    %v769 = vmul.f32 %v603, %v705
    %v770 = vmul.f32 %v605, %v706
    %v771 = vmul.f32 %v607, %v707
    %v772 = vmul.f32 %v609, %v708
    %v773 = vmul.f32 %v611, %v709
    %v774 = vmul.f32 %v613, %v710
    %v775 = vmul.f32 %v615, %v711
    %v776 = vmul.f32 %v617, %v712
    %v777 = vmul.f32 %v619, %v713
    %v778 = vmul.f32 %v621, %v714
    %v779 = vmul.f32 %v623, %v715
    %v780 = vmul.f32 %v625, %v716
    %v781 = vmul.f32 %v627, %v717
    %v782 = vmul.f32 %v629, %v718
    %v783 = vmul.f32 %v631, %v719
    %v784 = vmul.f32 %v633, %v720
    %v785 = vmul.f32 %v635, %v721
    %v786 = vmul.f32 %v637, %v722
    %v787 = vmul.f32 %v639, %v723
    %v788 = vmul.f32 %v641, %v724
    %v789 = vmul.f32 %v643, %v725
    %v790 = vmul.f32 %v645, %v726
    %v791 = vmul.f32 %v647, %v727
    %v792 = vmul.f32 %v649, %v728
    %v793 = vmul.f32 %v651, %v729
    %v794 = vmul.f32 %v653, %v730
    %v795 = vmul.f32 %v655, %v731
    %v796 = vmul.f32 %v657, %v732
    %v797 = vmul.f32 %v659, %v733
    %v798 = vmul.f32 %v661, %v734
    %v799 = vmul.f32 %v663, %v735
    %v800 = vmul.f32 %v665, %v736
    %v801 = vmul.f32 %v667, %v737
    %v802 = vmul.f32 %v669, %v738
    %v803 = vmul.f32 %v671, %v739
    %v804 = vmul.f32 %v673, %v740
    %v805 = vmul.f32 %v675, %v741
    %v806 = vmul.f32 %v677, %v742
    %v807 = vadd.f32 %v743, %v744
    %v808 = vadd.f32 %v807, %v745
    %v809 = vadd.f32 %v808, %v746
    %v810 = vadd.f32 %v809, %v747
    %v811 = vadd.f32 %v810, %v748
    %v812 = vadd.f32 %v811, %v749
    %v813 = vadd.f32 %v812, %v750
    %v814 = vadd.f32 %v813, %v751
    %v815 = vadd.f32 %v814, %v752
    %v816 = vadd.f32 %v815, %v753
    %v817 = vadd.f32 %v816, %v754
    %v818 = vadd.f32 %v817, %v755
    %v819 = vadd.f32 %v818, %v756
    %v820 = vadd.f32 %v819, %v757
    %v821 = vadd.f32 %v820, %v758
    %v822 = vadd.f32 %v821, %v759
    %v823 = vadd.f32 %v822, %v760
    %v824 = vadd.f32 %v823, %v761
    %v825 = vadd.f32 %v824, %v762
    %v826 = vadd.f32 %v825, %v763
    %v827 = vadd.f32 %v826, %v764
    %v828 = vadd.f32 %v827, %v765
    %v829 = vadd.f32 %v828, %v766
    %v830 = vadd.f32 %v829, %v767
    %v831 = vadd.f32 %v830, %v768
    %v832 = vadd.f32 %v831, %v769
    %v833 = vadd.f32 %v832, %v770
    %v834 = vadd.f32 %v833, %v771
    %v835 = vadd.f32 %v834, %v772
    %v836 = vadd.f32 %v835, %v773
    %v837 = vadd.f32 %v836, %v774
    %v838 = vadd.f32 %v837, %v775
    %v839 = vadd.f32 %v838, %v776
    %v840 = vadd.f32 %v839, %v777
    %v841 = vadd.f32 %v840, %v778
    %v842 = vadd.f32 %v841, %v779
    %v843 = vadd.f32 %v842, %v780
    %v844 = vadd.f32 %v843, %v781
    %v845 = vadd.f32 %v844, %v782
    %v846 = vadd.f32 %v845, %v783
    %v847 = vadd.f32 %v846, %v784
    %v848 = vadd.f32 %v847, %v785
    %v849 = vadd.f32 %v848, %v786
    %v850 = vadd.f32 %v849, %v787
    %v851 = vadd.f32 %v850, %v788
    %v852 = vadd.f32 %v851, %v789
    %v853 = vadd.f32 %v852, %v790
    %v854 = vadd.f32 %v853, %v791
    %v855 = vadd.f32 %v854, %v792
    %v856 = vadd.f32 %v855, %v793
    %v857 = vadd.f32 %v856, %v794
    %v858 = vadd.f32 %v857, %v795
    %v859 = vadd.f32 %v858, %v796
    %v860 = vadd.f32 %v859, %v797
    %v861 = vadd.f32 %v860, %v798
    %v862 = vadd.f32 %v861, %v799
    %v863 = vadd.f32 %v862, %v800
    %v864 = vadd.f32 %v863, %v801
    %v865 = vadd.f32 %v864, %v802
    %v866 = vadd.f32 %v865, %v803
    %v867 = vadd.f32 %v866, %v804
    %v868 = vadd.f32 %v867, %v805
    %v869 = vadd.f32 %v868, %v806
    %v870 = vrot.slane %v869, 4
    %v871 = vadd.f32 %v869, %v870
    %v872 = vrot.slane %v871, 2
    %v873 = vadd.f32 %v871, %v872
    %v874 = vrot.slane %v873, 1
    %v875 = vadd.f32 %v873, %v874
    %v876 = vadd.f32 %v678, %v875
    %877 = vst [vmem:[#allocation2] sm:$0x1] %v876
    %v878 = vld [vmem:[#allocation3] sm:$0x1]
    %v879 = vld [vmem:[%s2] sm:$0xff]
    %v880 = vld [vmem:[%s2 + $0x8] sm:$0xff]
    %v881 = vld [vmem:[%s2 + $0x10] sm:$0xff]
    %v882 = vld [vmem:[%s2 + $0x18] sm:$0xff]
    %v883 = vld [vmem:[%s2 + $0x20] sm:$0xff]
    %v884 = vld [vmem:[%s2 + $0x28] sm:$0xff]
    %v885 = vld [vmem:[%s2 + $0x30] sm:$0xff]
    %v886 = vld [vmem:[%s2 + $0x38] sm:$0xff]
    %v887 = vld [vmem:[%s2 + $0x40] sm:$0xff]
    %v888 = vld [vmem:[%s2 + $0x48] sm:$0xff]
    %v889 = vld [vmem:[%s2 + $0x50] sm:$0xff]
    %v890 = vld [vmem:[%s2 + $0x58] sm:$0xff]
    %v891 = vld [vmem:[%s2 + $0x60] sm:$0xff]
    %v892 = vld [vmem:[%s2 + $0x68] sm:$0xff]
    %v893 = vld [vmem:[%s2 + $0x70] sm:$0xff]
    %v894 = vld [vmem:[%s2 + $0x78] sm:$0xff]
    %v895 = vld [vmem:[%s2 + $0x80] sm:$0xff]
    %v896 = vld [vmem:[%s2 + $0x88] sm:$0xff]
    %v897 = vld [vmem:[%s2 + $0x90] sm:$0xff]
    %v898 = vld [vmem:[%s2 + $0x98] sm:$0xff]
    %v899 = vld [vmem:[%s2 + $0xa0] sm:$0xff]
    %v900 = vld [vmem:[%s2 + $0xa8] sm:$0xff]
    %v901 = vld [vmem:[%s2 + $0xb0] sm:$0xff]
    %v902 = vld [vmem:[%s2 + $0xb8] sm:$0xff]
    %v903 = vld [vmem:[%s2 + $0xc0] sm:$0xff]
    %v904 = vld [vmem:[%s2 + $0xc8] sm:$0xff]
    %v905 = vld [vmem:[%s2 + $0xd0] sm:$0xff]
    %v906 = vld [vmem:[%s2 + $0xd8] sm:$0xff]
    %v907 = vld [vmem:[%s2 + $0xe0] sm:$0xff]
    %v908 = vld [vmem:[%s2 + $0xe8] sm:$0xff]
    %v909 = vld [vmem:[%s2 + $0xf0] sm:$0xff]
    %v910 = vld [vmem:[%s2 + $0xf8] sm:$0xff]
    %v911 = vld [vmem:[%s2 + $0x100] sm:$0xff]
    %v912 = vld [vmem:[%s2 + $0x108] sm:$0xff]
    %v913 = vld [vmem:[%s2 + $0x110] sm:$0xff]
    %v914 = vld [vmem:[%s2 + $0x118] sm:$0xff]
    %v915 = vld [vmem:[%s2 + $0x120] sm:$0xff]
    %v916 = vld [vmem:[%s2 + $0x128] sm:$0xff]
    %v917 = vld [vmem:[%s2 + $0x130] sm:$0xff]
    %v918 = vld [vmem:[%s2 + $0x138] sm:$0xff]
    %v919 = vld [vmem:[%s2 + $0x140] sm:$0xff]
    %v920 = vld [vmem:[%s2 + $0x148] sm:$0xff]
    %v921 = vld [vmem:[%s2 + $0x150] sm:$0xff]
    %v922 = vld [vmem:[%s2 + $0x158] sm:$0xff]
    %v923 = vld [vmem:[%s2 + $0x160] sm:$0xff]
    %v924 = vld [vmem:[%s2 + $0x168] sm:$0xff]
    %v925 = vld [vmem:[%s2 + $0x170] sm:$0xff]
    %v926 = vld [vmem:[%s2 + $0x178] sm:$0xff]
    %v927 = vld [vmem:[%s2 + $0x180] sm:$0xff]
    %v928 = vld [vmem:[%s2 + $0x188] sm:$0xff]
    %v929 = vld [vmem:[%s2 + $0x190] sm:$0xff]
    %v930 = vld [vmem:[%s2 + $0x198] sm:$0xff]
    %v931 = vld [vmem:[%s2 + $0x1a0] sm:$0xff]
    %v932 = vld [vmem:[%s2 + $0x1a8] sm:$0xff]
    %v933 = vld [vmem:[%s2 + $0x1b0] sm:$0xff]
    %v934 = vld [vmem:[%s2 + $0x1b8] sm:$0xff]
    %v935 = vld [vmem:[%s2 + $0x1c0] sm:$0xff]
    %v936 = vld [vmem:[%s2 + $0x1c8] sm:$0xff]
    %v937 = vld [vmem:[%s2 + $0x1d0] sm:$0xff]
    %v938 = vld [vmem:[%s2 + $0x1d8] sm:$0xff]
    %v939 = vld [vmem:[%s2 + $0x1e0] sm:$0xff]
    %v940 = vld [vmem:[%s2 + $0x1e8] sm:$0xff]
    %v941 = vld [vmem:[%s2 + $0x1f0] sm:$0xff]
    %v942 = vld [vmem:[%s2 + $0x1f8] sm:$0xff]
    %944 = vset.pattern.permute.xlu0 0
    %945 = vperm.xlu0 %944, %v879
    %v946 = vpop.permute.xlu0 %945
    %949 = vset.pattern.permute.xlu0 0
    %950 = vperm.xlu0 %949, %v880
    %v951 = vpop.permute.xlu0 %950
    %954 = vset.pattern.permute.xlu0 0
    %955 = vperm.xlu0 %954, %v881
    %v956 = vpop.permute.xlu0 %955
    %959 = vset.pattern.permute.xlu0 0
    %960 = vperm.xlu0 %959, %v882
    %v961 = vpop.permute.xlu0 %960
    %964 = vset.pattern.permute.xlu0 0
    %965 = vperm.xlu0 %964, %v883
    %v966 = vpop.permute.xlu0 %965
    %969 = vset.pattern.permute.xlu0 0
    %970 = vperm.xlu0 %969, %v884
    %v971 = vpop.permute.xlu0 %970
    %974 = vset.pattern.permute.xlu0 0
    %975 = vperm.xlu0 %974, %v885
    %v976 = vpop.permute.xlu0 %975
    %979 = vset.pattern.permute.xlu0 0
    %980 = vperm.xlu0 %979, %v886
    %v981 = vpop.permute.xlu0 %980
    %984 = vset.pattern.permute.xlu0 0
    %985 = vperm.xlu0 %984, %v887
    %v986 = vpop.permute.xlu0 %985
    %989 = vset.pattern.permute.xlu0 0
    %990 = vperm.xlu0 %989, %v888
    %v991 = vpop.permute.xlu0 %990
    %994 = vset.pattern.permute.xlu0 0
    %995 = vperm.xlu0 %994, %v889
    %v996 = vpop.permute.xlu0 %995
    %999 = vset.pattern.permute.xlu0 0
    %1000 = vperm.xlu0 %999, %v890
    %v1001 = vpop.permute.xlu0 %1000
    %1004 = vset.pattern.permute.xlu0 0
    %1005 = vperm.xlu0 %1004, %v891
    %v1006 = vpop.permute.xlu0 %1005
    %1009 = vset.pattern.permute.xlu0 0
    %1010 = vperm.xlu0 %1009, %v892
    %v1011 = vpop.permute.xlu0 %1010
    %1014 = vset.pattern.permute.xlu0 0
    %1015 = vperm.xlu0 %1014, %v893
    %v1016 = vpop.permute.xlu0 %1015
    %1019 = vset.pattern.permute.xlu0 0
    %1020 = vperm.xlu0 %1019, %v894
    %v1021 = vpop.permute.xlu0 %1020
    %1024 = vset.pattern.permute.xlu0 0
    %1025 = vperm.xlu0 %1024, %v895
    %v1026 = vpop.permute.xlu0 %1025
    %1029 = vset.pattern.permute.xlu0 0
    %1030 = vperm.xlu0 %1029, %v896
    %v1031 = vpop.permute.xlu0 %1030
    %1034 = vset.pattern.permute.xlu0 0
    %1035 = vperm.xlu0 %1034, %v897
    %v1036 = vpop.permute.xlu0 %1035
    %1039 = vset.pattern.permute.xlu0 0
    %1040 = vperm.xlu0 %1039, %v898
    %v1041 = vpop.permute.xlu0 %1040
    %1044 = vset.pattern.permute.xlu0 0
    %1045 = vperm.xlu0 %1044, %v899
    %v1046 = vpop.permute.xlu0 %1045
    %1049 = vset.pattern.permute.xlu0 0
    %1050 = vperm.xlu0 %1049, %v900
    %v1051 = vpop.permute.xlu0 %1050
    %1054 = vset.pattern.permute.xlu0 0
    %1055 = vperm.xlu0 %1054, %v901
    %v1056 = vpop.permute.xlu0 %1055
    %1059 = vset.pattern.permute.xlu0 0
    %1060 = vperm.xlu0 %1059, %v902
    %v1061 = vpop.permute.xlu0 %1060
    %1064 = vset.pattern.permute.xlu0 0
    %1065 = vperm.xlu0 %1064, %v903
    %v1066 = vpop.permute.xlu0 %1065
    %1069 = vset.pattern.permute.xlu0 0
    %1070 = vperm.xlu0 %1069, %v904
    %v1071 = vpop.permute.xlu0 %1070
    %1074 = vset.pattern.permute.xlu0 0
    %1075 = vperm.xlu0 %1074, %v905
    %v1076 = vpop.permute.xlu0 %1075
    %1079 = vset.pattern.permute.xlu0 0
    %1080 = vperm.xlu0 %1079, %v906
    %v1081 = vpop.permute.xlu0 %1080
    %1084 = vset.pattern.permute.xlu0 0
    %1085 = vperm.xlu0 %1084, %v907
    %v1086 = vpop.permute.xlu0 %1085
    %1089 = vset.pattern.permute.xlu0 0
    %1090 = vperm.xlu0 %1089, %v908
    %v1091 = vpop.permute.xlu0 %1090
    %1094 = vset.pattern.permute.xlu0 0
    %1095 = vperm.xlu0 %1094, %v909
    %v1096 = vpop.permute.xlu0 %1095
    %1099 = vset.pattern.permute.xlu0 0
    %1100 = vperm.xlu0 %1099, %v910
    %v1101 = vpop.permute.xlu0 %1100
    %1104 = vset.pattern.permute.xlu0 0
    %1105 = vperm.xlu0 %1104, %v911
    %v1106 = vpop.permute.xlu0 %1105
    %1109 = vset.pattern.permute.xlu0 0
    %1110 = vperm.xlu0 %1109, %v912
    %v1111 = vpop.permute.xlu0 %1110
    %1114 = vset.pattern.permute.xlu0 0
    %1115 = vperm.xlu0 %1114, %v913
    %v1116 = vpop.permute.xlu0 %1115
    %1119 = vset.pattern.permute.xlu0 0
    %1120 = vperm.xlu0 %1119, %v914
    %v1121 = vpop.permute.xlu0 %1120
    %1124 = vset.pattern.permute.xlu0 0
    %1125 = vperm.xlu0 %1124, %v915
    %v1126 = vpop.permute.xlu0 %1125
    %1129 = vset.pattern.permute.xlu0 0
    %1130 = vperm.xlu0 %1129, %v916
    %v1131 = vpop.permute.xlu0 %1130
    %1134 = vset.pattern.permute.xlu0 0
    %1135 = vperm.xlu0 %1134, %v917
    %v1136 = vpop.permute.xlu0 %1135
    %1139 = vset.pattern.permute.xlu0 0
    %1140 = vperm.xlu0 %1139, %v918
    %v1141 = vpop.permute.xlu0 %1140
    %1144 = vset.pattern.permute.xlu0 0
    %1145 = vperm.xlu0 %1144, %v919
    %v1146 = vpop.permute.xlu0 %1145
    %1149 = vset.pattern.permute.xlu0 0
    %1150 = vperm.xlu0 %1149, %v920
    %v1151 = vpop.permute.xlu0 %1150
    %1154 = vset.pattern.permute.xlu0 0
    %1155 = vperm.xlu0 %1154, %v921
    %v1156 = vpop.permute.xlu0 %1155
    %1159 = vset.pattern.permute.xlu0 0
    %1160 = vperm.xlu0 %1159, %v922
    %v1161 = vpop.permute.xlu0 %1160
    %1164 = vset.pattern.permute.xlu0 0
    %1165 = vperm.xlu0 %1164, %v923
    %v1166 = vpop.permute.xlu0 %1165
    %1169 = vset.pattern.permute.xlu0 0
    %1170 = vperm.xlu0 %1169, %v924
    %v1171 = vpop.permute.xlu0 %1170
    %1174 = vset.pattern.permute.xlu0 0
    %1175 = vperm.xlu0 %1174, %v925
    %v1176 = vpop.permute.xlu0 %1175
    %1179 = vset.pattern.permute.xlu0 0
    %1180 = vperm.xlu0 %1179, %v926
    %v1181 = vpop.permute.xlu0 %1180
    %1184 = vset.pattern.permute.xlu0 0
    %1185 = vperm.xlu0 %1184, %v927
    %v1186 = vpop.permute.xlu0 %1185
    %1189 = vset.pattern.permute.xlu0 0
    %1190 = vperm.xlu0 %1189, %v928
    %v1191 = vpop.permute.xlu0 %1190
    %1194 = vset.pattern.permute.xlu0 0
    %1195 = vperm.xlu0 %1194, %v929
    %v1196 = vpop.permute.xlu0 %1195
    %1199 = vset.pattern.permute.xlu0 0
    %1200 = vperm.xlu0 %1199, %v930
    %v1201 = vpop.permute.xlu0 %1200
    %1204 = vset.pattern.permute.xlu0 0
    %1205 = vperm.xlu0 %1204, %v931
    %v1206 = vpop.permute.xlu0 %1205
    %1209 = vset.pattern.permute.xlu0 0
    %1210 = vperm.xlu0 %1209, %v932
    %v1211 = vpop.permute.xlu0 %1210
    %1214 = vset.pattern.permute.xlu0 0
    %1215 = vperm.xlu0 %1214, %v933
    %v1216 = vpop.permute.xlu0 %1215
    %1219 = vset.pattern.permute.xlu0 0
    %1220 = vperm.xlu0 %1219, %v934
    %v1221 = vpop.permute.xlu0 %1220
    %1224 = vset.pattern.permute.xlu0 0
    %1225 = vperm.xlu0 %1224, %v935
    %v1226 = vpop.permute.xlu0 %1225
    %1229 = vset.pattern.permute.xlu0 0
    %1230 = vperm.xlu0 %1229, %v936
    %v1231 = vpop.permute.xlu0 %1230
    %1234 = vset.pattern.permute.xlu0 0
    %1235 = vperm.xlu0 %1234, %v937
    %v1236 = vpop.permute.xlu0 %1235
    %1239 = vset.pattern.permute.xlu0 0
    %1240 = vperm.xlu0 %1239, %v938
    %v1241 = vpop.permute.xlu0 %1240
    %1244 = vset.pattern.permute.xlu0 0
    %1245 = vperm.xlu0 %1244, %v939
    %v1246 = vpop.permute.xlu0 %1245
    %1249 = vset.pattern.permute.xlu0 0
    %1250 = vperm.xlu0 %1249, %v940
    %v1251 = vpop.permute.xlu0 %1250
    %1254 = vset.pattern.permute.xlu0 0
    %1255 = vperm.xlu0 %1254, %v941
    %v1256 = vpop.permute.xlu0 %1255
    %1259 = vset.pattern.permute.xlu0 0
    %1260 = vperm.xlu0 %1259, %v942
    %v1261 = vpop.permute.xlu0 %1260
    %v1263 = vmul.f32 %v551, %v946
    %v1264 = vmul.f32 %v553, %v951
    %v1265 = vmul.f32 %v555, %v956
    %v1266 = vmul.f32 %v557, %v961
    %v1267 = vmul.f32 %v559, %v966
    %v1268 = vmul.f32 %v561, %v971
    %v1269 = vmul.f32 %v563, %v976
    %v1270 = vmul.f32 %v565, %v981
    %v1271 = vmul.f32 %v567, %v986
    %v1272 = vmul.f32 %v569, %v991
    %v1273 = vmul.f32 %v571, %v996
    %v1274 = vmul.f32 %v573, %v1001
    %v1275 = vmul.f32 %v575, %v1006
    %v1276 = vmul.f32 %v577, %v1011
    %v1277 = vmul.f32 %v579, %v1016
    %v1278 = vmul.f32 %v581, %v1021
    %v1279 = vmul.f32 %v583, %v1026
    %v1280 = vmul.f32 %v585, %v1031
    %v1281 = vmul.f32 %v587, %v1036
    %v1282 = vmul.f32 %v589, %v1041
    %v1283 = vmul.f32 %v591, %v1046
    %v1284 = vmul.f32 %v593, %v1051
    %v1285 = vmul.f32 %v595, %v1056
    %v1286 = vmul.f32 %v597, %v1061
    %v1287 = vmul.f32 %v599, %v1066
    %v1288 = vmul.f32 %v601, %v1071
    %v1289 = vmul.f32 %v603, %v1076
    %v1290 = vmul.f32 %v605, %v1081
    %v1291 = vmul.f32 %v607, %v1086
    %v1292 = vmul.f32 %v609, %v1091
    %v1293 = vmul.f32 %v611, %v1096
    %v1294 = vmul.f32 %v613, %v1101
    %v1295 = vmul.f32 %v615, %v1106
    %v1296 = vmul.f32 %v617, %v1111
    %v1297 = vmul.f32 %v619, %v1116
    %v1298 = vmul.f32 %v621, %v1121
    %v1299 = vmul.f32 %v623, %v1126
    %v1300 = vmul.f32 %v625, %v1131
    %v1301 = vmul.f32 %v627, %v1136
    %v1302 = vmul.f32 %v629, %v1141
    %v1303 = vmul.f32 %v631, %v1146
    %v1304 = vmul.f32 %v633, %v1151
    %v1305 = vmul.f32 %v635, %v1156
    %v1306 = vmul.f32 %v637, %v1161
    %v1307 = vmul.f32 %v639, %v1166
    %v1308 = vmul.f32 %v641, %v1171
    %v1309 = vmul.f32 %v643, %v1176
    %v1310 = vmul.f32 %v645, %v1181
    %v1311 = vmul.f32 %v647, %v1186
    %v1312 = vmul.f32 %v649, %v1191
    %v1313 = vmul.f32 %v651, %v1196
    %v1314 = vmul.f32 %v653, %v1201
    %v1315 = vmul.f32 %v655, %v1206
    %v1316 = vmul.f32 %v657, %v1211
    %v1317 = vmul.f32 %v659, %v1216
    %v1318 = vmul.f32 %v661, %v1221
    %v1319 = vmul.f32 %v663, %v1226
    %v1320 = vmul.f32 %v665, %v1231
    %v1321 = vmul.f32 %v667, %v1236
    %v1322 = vmul.f32 %v669, %v1241
    %v1323 = vmul.f32 %v671, %v1246
    %v1324 = vmul.f32 %v673, %v1251
    %v1325 = vmul.f32 %v675, %v1256
    %v1326 = vmul.f32 %v677, %v1261
    %v1327 = vadd.f32 %v1263, %v1264
    %v1328 = vadd.f32 %v1327, %v1265
    %v1329 = vadd.f32 %v1328, %v1266
    %v1330 = vadd.f32 %v1329, %v1267
    %v1331 = vadd.f32 %v1330, %v1268
    %v1332 = vadd.f32 %v1331, %v1269
    %v1333 = vadd.f32 %v1332, %v1270
    %v1334 = vadd.f32 %v1333, %v1271
    %v1335 = vadd.f32 %v1334, %v1272
    %v1336 = vadd.f32 %v1335, %v1273
    %v1337 = vadd.f32 %v1336, %v1274
    %v1338 = vadd.f32 %v1337, %v1275
    %v1339 = vadd.f32 %v1338, %v1276
    %v1340 = vadd.f32 %v1339, %v1277
    %v1341 = vadd.f32 %v1340, %v1278
    %v1342 = vadd.f32 %v1341, %v1279
    %v1343 = vadd.f32 %v1342, %v1280
    %v1344 = vadd.f32 %v1343, %v1281
    %v1345 = vadd.f32 %v1344, %v1282
    %v1346 = vadd.f32 %v1345, %v1283
    %v1347 = vadd.f32 %v1346, %v1284
    %v1348 = vadd.f32 %v1347, %v1285
    %v1349 = vadd.f32 %v1348, %v1286
    %v1350 = vadd.f32 %v1349, %v1287
    %v1351 = vadd.f32 %v1350, %v1288
    %v1352 = vadd.f32 %v1351, %v1289
    %v1353 = vadd.f32 %v1352, %v1290
    %v1354 = vadd.f32 %v1353, %v1291
    %v1355 = vadd.f32 %v1354, %v1292
    %v1356 = vadd.f32 %v1355, %v1293
    %v1357 = vadd.f32 %v1356, %v1294
    %v1358 = vadd.f32 %v1357, %v1295
    %v1359 = vadd.f32 %v1358, %v1296
    %v1360 = vadd.f32 %v1359, %v1297
    %v1361 = vadd.f32 %v1360, %v1298
    %v1362 = vadd.f32 %v1361, %v1299
    %v1363 = vadd.f32 %v1362, %v1300
    %v1364 = vadd.f32 %v1363, %v1301
    %v1365 = vadd.f32 %v1364, %v1302
    %v1366 = vadd.f32 %v1365, %v1303
    %v1367 = vadd.f32 %v1366, %v1304
    %v1368 = vadd.f32 %v1367, %v1305
    %v1369 = vadd.f32 %v1368, %v1306
    %v1370 = vadd.f32 %v1369, %v1307
    %v1371 = vadd.f32 %v1370, %v1308
    %v1372 = vadd.f32 %v1371, %v1309
    %v1373 = vadd.f32 %v1372, %v1310
    %v1374 = vadd.f32 %v1373, %v1311
    %v1375 = vadd.f32 %v1374, %v1312
    %v1376 = vadd.f32 %v1375, %v1313
    %v1377 = vadd.f32 %v1376, %v1314
    %v1378 = vadd.f32 %v1377, %v1315
    %v1379 = vadd.f32 %v1378, %v1316
    %v1380 = vadd.f32 %v1379, %v1317
    %v1381 = vadd.f32 %v1380, %v1318
    %v1382 = vadd.f32 %v1381, %v1319
    %v1383 = vadd.f32 %v1382, %v1320
    %v1384 = vadd.f32 %v1383, %v1321
    %v1385 = vadd.f32 %v1384, %v1322
    %v1386 = vadd.f32 %v1385, %v1323
    %v1387 = vadd.f32 %v1386, %v1324
    %v1388 = vadd.f32 %v1387, %v1325
    %v1389 = vadd.f32 %v1388, %v1326
    %v1390 = vrot.slane %v1389, 4
    %v1391 = vadd.f32 %v1389, %v1390
    %v1392 = vrot.slane %v1391, 2
    %v1393 = vadd.f32 %v1391, %v1392
    %v1394 = vrot.slane %v1393, 1
    %v1395 = vadd.f32 %v1393, %v1394
    %v1396 = vadd.f32 %v878, %v1395
    %1397 = vst [vmem:[#allocation3] sm:$0x1] %v1396
    // Predicated region
    $region22: #{tpu_custom_call.1} parent=1 // pred_check
      %p1398 = pneg %p32
    $region23: #{tpu_custom_call.1} parent=1 // pred_check_branch
      %1400 = sbr.rel (%p1398) target = $region25
    $region24: #{tpu_custom_call.1} parent=1 // pred_region
      %v1401 = vld [vmem:[#allocation2] sm:$0x1]
      %vm1402 = vcmask 1040384
      %v1403 = vsel %vm1402, %v1401, 0.0
      %1404 = vadd.xlane.f32.xlu0 %v1403
      %v1405 = vpop.xlane.xlu0 %1404
      %v1406 = vrot.slane %v1405, 4
      %v1407 = vadd.f32 %v1405, %v1406
      %v1408 = vrot.slane %v1407, 2
      %v1409 = vadd.f32 %v1407, %v1408
      %v1410 = vrot.slane %v1409, 1
      %v1411 = vadd.f32 %v1409, %v1410
      %s1412 = vtos %v1411
      %v1413 = vstv %s1412
      %vm1414 = vcmask 0
      %1415 = vst.msk [vmem:[#allocation7] sm:$0x1] %vm1414, %v1413
      %v1416 = vlaneseq
      %v1417 = vand.u32 %v1416, 127
      %vm1418 = vcmp.lt.s32.totalorder %v1417, 100
      %v1419 = vld [vmem:[#allocation3] sm:$0x1]
      %v1420 = vsub.f32 %v1419, 200.0
      %v1421 = vsel %vm1418, %v1420, 0.0
      %v1422 = vmul.f32 %v1421, %v1421
      %v1423 = vsel %vm1402, %v1422, 0.0
      %1424 = vadd.xlane.f32.xlu0 %v1423
      %v1425 = vpop.xlane.xlu0 %1424
      %v1426 = vrot.slane %v1425, 4
      %v1427 = vadd.f32 %v1425, %v1426
      %v1428 = vrot.slane %v1427, 2
      %v1429 = vadd.f32 %v1427, %v1428
      %v1430 = vrot.slane %v1429, 1
      %v1431 = vadd.f32 %v1429, %v1430
      %s1432 = vtos %v1431
      %v1433 = vstv %s1432
      %1434 = vst.msk [vmem:[#allocation8] sm:$0x1] %vm1414, %v1433
    $region25: #{tpu_custom_call.1} parent=1 // pred_fallthru
      _
    // Predicated region
    $region26: #{tpu_custom_call.1} parent=1 // pred_check
      _
    $region27: #{tpu_custom_call.1} parent=1 // pred_check_branch
      %1436 = sbr.rel (0) target = $region29
    $region28: #{tpu_custom_call.1} parent=1 // pred_region
      %s1438 = ssub.s32 16, 16
      %1439 = vsyncadd [#allocation6], %s1438
      %s1441 = sshll.u32 [#allocation7], 4
      %s1442 = int_to_ptr.vmem [resolvable:$true] %s1441
      %1444 = dma.vmem_to_hbm [thread:$0]  %s1442, 16, %s3, [#allocation6]
    $region29: #{tpu_custom_call.1} parent=1 // pred_fallthru
      _
    // Predicated region
    $region30: #{tpu_custom_call.1} parent=1 // pred_check
      _
    $region31: #{tpu_custom_call.1} parent=1 // pred_check_branch
      %1446 = sbr.rel (0) target = $region33
    $region32: #{tpu_custom_call.1} parent=1 // pred_region
      %s1448 = ssub.s32 16, 16
      %1449 = vsyncadd [#allocation9], %s1448
      %s1451 = sshll.u32 [#allocation8], 4
      %s1452 = int_to_ptr.vmem [resolvable:$true] %s1451
      %1454 = dma.vmem_to_hbm [thread:$0]  %s1452, 16, %s4, [#allocation9]
    $region33: #{tpu_custom_call.1} parent=1 // pred_fallthru
      _
    // Predicated region
    $region34: #{tpu_custom_call.1} parent=1 // pred_check
      _
    $region35: #{tpu_custom_call.1} parent=1 // pred_check_branch
      %1456 = sbr.rel (0) target = $region37
    $region36: #{tpu_custom_call.1} parent=1 // pred_region
      %1457 = dma.done [#allocation6], 16
    $region37: #{tpu_custom_call.1} parent=1 // pred_fallthru
      _
    // Predicated region
    $region38: #{tpu_custom_call.1} parent=1 // pred_check
      _
    $region39: #{tpu_custom_call.1} parent=1 // pred_check_branch
      %1459 = sbr.rel (0) target = $region41
    $region40: #{tpu_custom_call.1} parent=1 // pred_region
      %1460 = dma.done [#allocation9], 16
    $region41: #{tpu_custom_call.1} parent=1 // pred_fallthru
      _
    %1461 = vsyncpa [#allocation5], 1
    %1462 = vsyncpa [#allocation6], 1
    %1463 = vsyncpa [#allocation9], 1

</llo_original>
